<compile_context>
chip_gen: v7x
topology: tpu7x:2x2x1
jax: 0.10.0
libtpu: 0.0.40
codegen_flags: <defaults>
</compile_context>

<pallas_src>
import jax
import jax.numpy as jnp
from jax.experimental import pallas as pl
from jax.experimental.pallas import tpu as pltpu

NEG_SLOPE = 0.01  # PyTorch nn.LeakyReLU / F.leaky_relu default


def _leaky_relu(x):
    return jnp.where(x >= 0, x, NEG_SLOPE * x)


def encoder_kernel(x_ref, adj_ref, wg_ref, bg_ref, w1_ref, b1_ref,
                   wo_ref, bo_ref, out_ref):
    # Per grid step (TB graphs):
    #   x_ref   : (TB, N, Din)   adj_ref : (TB, N, N)
    #   wg_ref  : (Din, H0)      bg_ref  : (1, H0)
    #   w1_ref  : (H0, H1)       b1_ref  : (1, H1)
    #   wo_ref  : (H1, Z)        bo_ref  : (1, Z)
    #   out_ref : (TB, Z)
    TB, N, Din = x_ref.shape
    H0 = wg_ref.shape[1]
    H1 = w1_ref.shape[1]

    x = x_ref[...]      # (TB, N, Din)
    adj = adj_ref[...]  # (TB, N, N)

    # GraphConv(add_self=False): adj @ x @ Wg + bg, re-associated so the dense
    # weight matmul runs over the flattened (TB*N, Din) axis.
    xw = jnp.dot(x.reshape(TB * N, Din), wg_ref[...],
                 preferred_element_type=jnp.float32).reshape(TB, N, H0)
    h = jnp.einsum("bnm,bmh->bnh", adj, xw,
                   preferred_element_type=jnp.float32)
    h = h.reshape(TB * N, H0) + bg_ref[...]
    h = _leaky_relu(h)

    # multidense_layer: Linear -> LeakyReLU -> Dropout(p=0.0) (identity)
    h = jnp.dot(h, w1_ref[...], preferred_element_type=jnp.float32) + b1_ref[...]
    h = _leaky_relu(h).reshape(TB, N, H1)

    # Fold the node-sum through the output linear:
    #   sum_n(h @ Wo + bo) = (sum_n h) @ Wo + N*bo
    s = jnp.sum(h, axis=1)                                        # (TB, H1)
    out = jnp.dot(s, wo_ref[...],
                  preferred_element_type=jnp.float32) + jnp.float32(N) * bo_ref[...]
    out_ref[...] = jnp.tanh(out)


def encoder_forward(x, adj, params, *, tile_b=None):
    """x: (B, N, Din) f32, adj: (B, N, N) f32 -> (B, Z) f32."""
    wg, bg, w1, b1, wo, bo = params
    B, N, Din = x.shape
    Z = wo.shape[1]

    # TB graphs per grid step. For small B take the whole batch in one step
    # (block == full array dim, satisfies TPU tiling); for large B use a
    # multiple of 8 so the (TB, Z) output block is 8-sublane aligned.
    # TODO(synk): for very large N, shrink tile_b to fit the VMEM budget
    # (2 * TB * (N^2 + N*Din) * 4B double-buffered), especially on v7x.
    if tile_b is None:
        tile_b = B if B <= 64 else 64

    B_pad = tile_b * pl.cdiv(B, tile_b)
    if B_pad != B:
        pad = B_pad - B
        x = jnp.pad(x, ((0, pad), (0, 0), (0, 0)))
        adj = jnp.pad(adj, ((0, pad), (0, 0), (0, 0)))

    def wspec(shape):
        nd = len(shape)
        return pl.BlockSpec(shape, lambda b, _nd=nd: (0,) * _nd)

    out = pl.pallas_call(
        encoder_kernel,
        out_shape=jax.ShapeDtypeStruct((B_pad, Z), jnp.float32),
        grid=(B_pad // tile_b,),
        in_specs=[
            pl.BlockSpec((tile_b, N, Din), lambda b: (b, 0, 0)),   # x
            pl.BlockSpec((tile_b, N, N), lambda b: (b, 0, 0)),     # adj
            wspec(wg.shape), wspec(bg.shape),
            wspec(w1.shape), wspec(b1.shape),
            wspec(wo.shape), wspec(bo.shape),
        ],
        out_specs=pl.BlockSpec((tile_b, Z), lambda b: (b, 0)),
        compiler_params=pltpu.CompilerParams(
            dimension_semantics=("parallel",)),
    )(x, adj, wg, bg, w1, b1, wo, bo)
    return out[:B]


def encoder_reference(x, adj, params):
    """Pure-JAX reference mirroring the PyTorch forward."""
    wg, bg, w1, b1, wo, bo = params
    h = jnp.einsum("bnm,bmd->bnd", adj, x)
    h = h @ wg + bg
    h = _leaky_relu(h)
    h = _leaky_relu(h @ w1 + b1)        # Dropout(0.0) is identity
    h = h @ wo + bo
    return jnp.tanh(jnp.sum(h, axis=1))


def init_params(key, input_dim, linear_dim, z_dim):
    # TODO(synk): GraphConv's exact init (xavier etc.) is not specified in the
    # snippet; deterministic normal inits — forward semantics match.
    assert len(linear_dim) == 2, "script instantiates linear_dim of length 2"
    ks = jax.random.split(key, 6)
    wg = jax.random.normal(ks[0], (input_dim, linear_dim[0]), jnp.float32) * 0.1
    bg = jax.random.normal(ks[1], (1, linear_dim[0]), jnp.float32) * 0.1
    w1 = jax.random.normal(ks[2], (linear_dim[0], linear_dim[1]), jnp.float32) * 0.1
    b1 = jax.random.normal(ks[3], (1, linear_dim[1]), jnp.float32) * 0.1
    wo = jax.random.normal(ks[4], (linear_dim[1], z_dim), jnp.float32) * 0.1
    bo = jax.random.normal(ks[5], (1, z_dim), jnp.float32) * 0.1
    return (wg, bg, w1, b1, wo, bo)


if __name__ == "__main__":
    B, N, INPUT_DIM = 2, 8, 16
    LINEAR_DIM = [32, 32]
    Z_DIM = 8

    key = jax.random.PRNGKey(0)
    kx, kadj, kp = jax.random.split(key, 3)

    x = jax.random.normal(kx, (B, N, INPUT_DIM), jnp.float32)
    # Symmetric adjacency with self loops (values don't matter for the kernel).
    a = jax.random.uniform(kadj, (B, N, N), jnp.float32)
    adj = (a + jnp.swapaxes(a, 1, 2)) * 0.5 + jnp.eye(N, dtype=jnp.float32)[None]

    params = init_params(kp, INPUT_DIM, LINEAR_DIM, Z_DIM)

    z = encoder_forward(x, adj, params)
    z = jax.block_until_ready(z)

    z_ref = encoder_reference(x, adj, params)
    assert z.shape == (B, Z_DIM)
    assert jnp.allclose(z, z_ref, atol=1e-5, rtol=1e-5), "mismatch vs reference"

    print("KERNEL_OK")
</pallas_src>

<mosaic_0001>
module attributes {stable_mosaic.version = 11 : i64} {
  func.func @encoder_kernel(%arg0: i32, %arg1: memref<2x8x16xf32, #tpu.memory_space<vmem>>, %arg2: memref<2x8x8xf32, #tpu.memory_space<vmem>>, %arg3: memref<16x32xf32, #tpu.memory_space<vmem>>, %arg4: memref<1x32xf32, #tpu.memory_space<vmem>>, %arg5: memref<32x32xf32, #tpu.memory_space<vmem>>, %arg6: memref<1x32xf32, #tpu.memory_space<vmem>>, %arg7: memref<32x8xf32, #tpu.memory_space<vmem>>, %arg8: memref<1x8xf32, #tpu.memory_space<vmem>>, %arg9: memref<2x8xf32, #tpu.memory_space<vmem>>) attributes {dimension_semantics = [#tpu.dimension_semantics<parallel>], iteration_bounds = array<i64: 1>, scalar_prefetch = 0 : i64, scratch_operands = 0 : i64, tpu.core_type = #tpu.core_type<tc>, window_params = [{transform_indices = @transform_0, window_bounds = array<i64: 2, 8, 16>}, {transform_indices = @transform_1, window_bounds = array<i64: 2, 8, 8>}, {pipeline_mode = #tpu.pipeline_mode<synchronous>, transform_indices = @transform_2, window_bounds = array<i64: 16, 32>}, {pipeline_mode = #tpu.pipeline_mode<synchronous>, transform_indices = @transform_3, window_bounds = array<i64: 1, 32>}, {pipeline_mode = #tpu.pipeline_mode<synchronous>, transform_indices = @transform_4, window_bounds = array<i64: 32, 32>}, {pipeline_mode = #tpu.pipeline_mode<synchronous>, transform_indices = @transform_5, window_bounds = array<i64: 1, 32>}, {pipeline_mode = #tpu.pipeline_mode<synchronous>, transform_indices = @transform_6, window_bounds = array<i64: 32, 8>}, {pipeline_mode = #tpu.pipeline_mode<synchronous>, transform_indices = @transform_7, window_bounds = array<i64: 1, 8>}, {transform_indices = @transform_8, window_bounds = array<i64: 2, 8>}]} {
    %c0 = arith.constant 0 : index
    %c0_0 = arith.constant 0 : index
    %c0_1 = arith.constant 0 : index
    %0 = vector.load %arg1[%c0, %c0_0, %c0_1] : memref<2x8x16xf32, #tpu.memory_space<vmem>>, vector<2x8x16xf32>
    %c0_2 = arith.constant 0 : index
    %c0_3 = arith.constant 0 : index
    %c0_4 = arith.constant 0 : index
    %1 = vector.load %arg2[%c0_2, %c0_3, %c0_4] : memref<2x8x8xf32, #tpu.memory_space<vmem>>, vector<2x8x8xf32>
    %2 = vector.shape_cast %0 : vector<2x8x16xf32> to vector<16x16xf32>
    %c0_5 = arith.constant 0 : index
    %c0_6 = arith.constant 0 : index
    %3 = vector.load %arg3[%c0_5, %c0_6] : memref<16x32xf32, #tpu.memory_space<vmem>>, vector<16x32xf32>
    %cst = arith.constant dense<0.000000e+00> : vector<16x32xf32>
    %4 = tpu.matmul %2, %3, %cst {dimension_numbers = #tpu.dot_dimension_numbers<[1], [0], [0], [1], [0, 0, 1, 1], [], []>} : vector<16x16xf32>, vector<16x32xf32>, vector<16x32xf32> -> vector<16x32xf32>
    %5 = vector.shape_cast %4 : vector<16x32xf32> to vector<2x8x32xf32>
    "tpu.trace_start"() <{level = 10 : i32, message = "bnm,bmh->bnh"}> : () -> ()
    %cst_7 = arith.constant dense<0.000000e+00> : vector<2x8x32xf32>
    %6 = tpu.matmul %1, %5, %cst_7 {dimension_numbers = #tpu.dot_dimension_numbers<[2], [1], [1], [2], [0, 0, 0, 1, 1, 2], [0], [0]>} : vector<2x8x8xf32>, vector<2x8x32xf32>, vector<2x8x32xf32> -> vector<2x8x32xf32>
    "tpu.trace_stop"() : () -> ()
    %7 = vector.shape_cast %6 : vector<2x8x32xf32> to vector<16x32xf32>
    %c0_8 = arith.constant 0 : index
    %c0_9 = arith.constant 0 : index
    %8 = vector.load %arg4[%c0_8, %c0_9] : memref<1x32xf32, #tpu.memory_space<vmem>>, vector<1x32xf32>
    %9 = vector.broadcast %8 : vector<1x32xf32> to vector<16x32xf32>
    %10 = arith.addf %7, %9 : vector<16x32xf32>
    %cst_10 = arith.constant 0.000000e+00 : f32
    %11 = vector.broadcast %cst_10 : f32 to vector<16x32xf32>
    %12 = arith.cmpf oge, %10, %11 : vector<16x32xf32>
    %cst_11 = arith.constant 0.00999999977 : f32
    %13 = vector.broadcast %cst_11 : f32 to vector<16x32xf32>
    %14 = arith.mulf %13, %10 : vector<16x32xf32>
    %15 = arith.select %12, %10, %14 : vector<16x32xi1>, vector<16x32xf32>
    %c0_12 = arith.constant 0 : index
    %c0_13 = arith.constant 0 : index
    %16 = vector.load %arg5[%c0_12, %c0_13] : memref<32x32xf32, #tpu.memory_space<vmem>>, vector<32x32xf32>
    %cst_14 = arith.constant dense<0.000000e+00> : vector<16x32xf32>
    %17 = tpu.matmul %15, %16, %cst_14 {dimension_numbers = #tpu.dot_dimension_numbers<[1], [0], [0], [1], [0, 0, 1, 1], [], []>} : vector<16x32xf32>, vector<32x32xf32>, vector<16x32xf32> -> vector<16x32xf32>
    %c0_15 = arith.constant 0 : index
    %c0_16 = arith.constant 0 : index
    %18 = vector.load %arg6[%c0_15, %c0_16] : memref<1x32xf32, #tpu.memory_space<vmem>>, vector<1x32xf32>
    %19 = vector.broadcast %18 : vector<1x32xf32> to vector<16x32xf32>
    %20 = arith.addf %17, %19 : vector<16x32xf32>
    %cst_17 = arith.constant 0.000000e+00 : f32
    %21 = vector.broadcast %cst_17 : f32 to vector<16x32xf32>
    %22 = arith.cmpf oge, %20, %21 : vector<16x32xf32>
    %cst_18 = arith.constant 0.00999999977 : f32
    %23 = vector.broadcast %cst_18 : f32 to vector<16x32xf32>
    %24 = arith.mulf %23, %20 : vector<16x32xf32>
    %25 = arith.select %22, %20, %24 : vector<16x32xi1>, vector<16x32xf32>
    %26 = vector.shape_cast %25 : vector<16x32xf32> to vector<2x8x32xf32>
    %cst_19 = arith.constant dense<0.000000e+00> : vector<2x32xf32>
    %27 = vector.multi_reduction <add>, %26, %cst_19 [1] : vector<2x8x32xf32> to vector<2x32xf32>
    %c0_20 = arith.constant 0 : index
    %c0_21 = arith.constant 0 : index
    %28 = vector.load %arg7[%c0_20, %c0_21] : memref<32x8xf32, #tpu.memory_space<vmem>>, vector<32x8xf32>
    %cst_22 = arith.constant dense<0.000000e+00> : vector<2x8xf32>
    %29 = tpu.matmul %27, %28, %cst_22 {dimension_numbers = #tpu.dot_dimension_numbers<[1], [0], [0], [1], [0, 0, 1, 1], [], []>} : vector<2x32xf32>, vector<32x8xf32>, vector<2x8xf32> -> vector<2x8xf32>
    %c0_23 = arith.constant 0 : index
    %c0_24 = arith.constant 0 : index
    %30 = vector.load %arg8[%c0_23, %c0_24] : memref<1x8xf32, #tpu.memory_space<vmem>>, vector<1x8xf32>
    %cst_25 = arith.constant 8.000000e+00 : f32
    %31 = vector.broadcast %cst_25 : f32 to vector<1x8xf32>
    %32 = arith.mulf %31, %30 : vector<1x8xf32>
    %33 = vector.broadcast %32 : vector<1x8xf32> to vector<2x8xf32>
    %34 = arith.addf %29, %33 : vector<2x8xf32>
    %35 = math.tanh %34 : vector<2x8xf32>
    %c0_26 = arith.constant 0 : index
    %c0_27 = arith.constant 0 : index
    %36 = vector.load %arg9[%c0_26, %c0_27] : memref<2x8xf32, #tpu.memory_space<vmem>>, vector<2x8xf32>
    tpu.vector_store %arg9[%c0_26, %c0_27], %35 {strides = array<i32>} : memref<2x8xf32, #tpu.memory_space<vmem>>, vector<2x8xf32>,
    return
  }
  func.func @transform_0(%arg0: i32) -> (i32, i32, i32) {
    %c0_i32 = arith.constant 0 : i32
    %c0_i32_0 = arith.constant 0 : i32
    %c0_i32_1 = arith.constant 0 : i32
    return %arg0, %c0_i32, %c0_i32_0 : i32, i32, i32
  }
  func.func @transform_1(%arg0: i32) -> (i32, i32, i32) {
    %c0_i32 = arith.constant 0 : i32
    %c0_i32_0 = arith.constant 0 : i32
    %c0_i32_1 = arith.constant 0 : i32
    return %arg0, %c0_i32, %c0_i32_0 : i32, i32, i32
  }
  func.func @transform_2(%arg0: i32) -> (i32, i32) {
    %c0_i32 = arith.constant 0 : i32
    %c0_i32_0 = arith.constant 0 : i32
    %c0_i32_1 = arith.constant 0 : i32
    return %c0_i32, %c0_i32_0 : i32, i32
  }
  func.func @transform_3(%arg0: i32) -> (i32, i32) {
    %c0_i32 = arith.constant 0 : i32
    %c0_i32_0 = arith.constant 0 : i32
    %c0_i32_1 = arith.constant 0 : i32
    return %c0_i32, %c0_i32_0 : i32, i32
  }
  func.func @transform_4(%arg0: i32) -> (i32, i32) {
    %c0_i32 = arith.constant 0 : i32
    %c0_i32_0 = arith.constant 0 : i32
    %c0_i32_1 = arith.constant 0 : i32
    return %c0_i32, %c0_i32_0 : i32, i32
  }
  func.func @transform_5(%arg0: i32) -> (i32, i32) {
    %c0_i32 = arith.constant 0 : i32
    %c0_i32_0 = arith.constant 0 : i32
    %c0_i32_1 = arith.constant 0 : i32
    return %c0_i32, %c0_i32_0 : i32, i32
  }
  func.func @transform_6(%arg0: i32) -> (i32, i32) {
    %c0_i32 = arith.constant 0 : i32
    %c0_i32_0 = arith.constant 0 : i32
    %c0_i32_1 = arith.constant 0 : i32
    return %c0_i32, %c0_i32_0 : i32, i32
  }
  func.func @transform_7(%arg0: i32) -> (i32, i32) {
    %c0_i32 = arith.constant 0 : i32
    %c0_i32_0 = arith.constant 0 : i32
    %c0_i32_1 = arith.constant 0 : i32
    return %c0_i32, %c0_i32_0 : i32, i32
  }
  func.func @transform_8(%arg0: i32) -> (i32, i32) {
    %c0_i32 = arith.constant 0 : i32
    %c0_i32_0 = arith.constant 0 : i32
    return %arg0, %c0_i32 : i32, i32
  }
}

</mosaic_0001>

<llo_original>
// kernel: tpu_custom_call.1
$region0: #{tpu_custom_call.1}
  #allocation0 [shape = 'u32[]', space=smem, size = 0x4, offset = 0x4, fixed_abs, tag = 'smem constant byte address 0x4 - core index']
  #allocation1 [shape = 'u32[144,128]{1,0:T(1,128)}', space=vmem, size = 0x12000, scoped, tag = 'internal scratch']
  %s0 = inlined_call_operand.vmem [shape: f32[2,8,16], index: 0, kind: input, shape index: {}]
  %s1 = inlined_call_operand.hbm [shape: f32[2,8,8], index: 1, kind: input, shape index: {}]
  %s2 = inlined_call_operand.hbm [shape: f32[16,32], index: 2, kind: input, shape index: {}]
  %s3 = inlined_call_operand.vmem [shape: f32[1,32], index: 3, kind: input, shape index: {}]
  %s4 = inlined_call_operand.vmem [shape: f32[32,32], index: 4, kind: input, shape index: {}]
  %s5 = inlined_call_operand.vmem [shape: f32[1,32], index: 5, kind: input, shape index: {}]
  %s6 = inlined_call_operand.vmem [shape: f32[32,8], index: 6, kind: input, shape index: {}]
  %s7 = inlined_call_operand.vmem [shape: f32[1,8], index: 7, kind: input, shape index: {}]
  %s8 = inlined_call_operand.hbm [shape: f32[2,8], index: 8, kind: output, shape index: {}]
  %s9 = sld [smem:[#allocation0]]
  $region50: #{tpu_custom_call.1} parent=0
    _
  %s11 = ssub.s32 1, %s9
  %s12 = scalar_select 0, %s11, %s9
  $region1: #{tpu_custom_call.1} parent=0
    #allocation2 [shape = 'u8[8192]{0}', space=vmem, size = 0x2000, scoped, tag = 'input window, operand 1, single buffered']
    #allocation3 [shape = 's32[1]{0}', space=sflag, size = 0x4, scoped, tag = 'scoped memory for tpu_custom_call.1']
    #allocation4 [shape = 's32[1]{0}', space=sflag, size = 0x4, scoped, tag = 'scoped memory for tpu_custom_call.1']
    #allocation5 [shape = 'u8[8192]{0}', space=vmem, size = 0x2000, scoped, tag = 'input window, operand 2, single buffered']
    #allocation6 [shape = 's32[1]{0}', space=sflag, size = 0x4, scoped, tag = 'scoped memory for tpu_custom_call.1']
    #allocation7 [shape = 'u8[1024]{0}', space=vmem, size = 0x400, scoped, tag = 'output window, operand 0, single buffered']
    %13 = vsyncpa [#allocation3], 0
    %14 = vsyncpa [#allocation6], 0
    %15 = vsyncpa [#allocation4], 0
    // Predicated region
    $region2: #{tpu_custom_call.1} parent=1 // pred_check
      _
    $region3: #{tpu_custom_call.1} parent=1 // pred_check_branch
      %17 = sbr.rel (0) target = $region5
    $region4: #{tpu_custom_call.1} parent=1 // pred_region
      _
    $region5: #{tpu_custom_call.1} parent=1 // pred_fallthru
      _
    // Predicated region
    $region6: #{tpu_custom_call.1} parent=1 // pred_check
      _
    $region7: #{tpu_custom_call.1} parent=1 // pred_check_branch
      %19 = sbr.rel (0) target = $region9
    $region8: #{tpu_custom_call.1} parent=1 // pred_region
      %s21 = ssub.s32 256, 256
      %22 = vsyncadd [#allocation3], %s21
      %s23 = sshll.u32 [#allocation2], 4
      %s24 = int_to_ptr.vmem [resolvable:$true] %s23
      %29 = dma.hbm_to_vmem [thread:$0]  %s1, 256, %s24, [#allocation3], 128, 128, 8
    $region9: #{tpu_custom_call.1} parent=1 // pred_fallthru
      _
    // Predicated region
    $region10: #{tpu_custom_call.1} parent=1 // pred_check
      _
    $region11: #{tpu_custom_call.1} parent=1 // pred_check_branch
      %31 = sbr.rel (0) target = $region13
    $region12: #{tpu_custom_call.1} parent=1 // pred_region
      %s33 = ssub.s32 256, 256
      %34 = vsyncadd [#allocation6], %s33
      %s35 = sshll.u32 [#allocation5], 4
      %s36 = int_to_ptr.vmem [resolvable:$true] %s35
      %41 = dma.hbm_to_vmem [thread:$0]  %s2, 256, %s36, [#allocation6], 128, 128, 8
    $region13: #{tpu_custom_call.1} parent=1 // pred_fallthru
      _
    // Predicated region
    $region14: #{tpu_custom_call.1} parent=1 // pred_check
      _
    $region15: #{tpu_custom_call.1} parent=1 // pred_check_branch
      %43 = sbr.rel (0) target = $region17
    $region16: #{tpu_custom_call.1} parent=1 // pred_region
      _
    $region17: #{tpu_custom_call.1} parent=1 // pred_fallthru
      _
    // Predicated region
    $region18: #{tpu_custom_call.1} parent=1 // pred_check
      _
    $region19: #{tpu_custom_call.1} parent=1 // pred_check_branch
      %45 = sbr.rel (0) target = $region21
    $region20: #{tpu_custom_call.1} parent=1 // pred_region
      _
    $region21: #{tpu_custom_call.1} parent=1 // pred_fallthru
      _
    // Predicated region
    $region22: #{tpu_custom_call.1} parent=1 // pred_check
      _
    $region23: #{tpu_custom_call.1} parent=1 // pred_check_branch
      %47 = sbr.rel (0) target = $region25
    $region24: #{tpu_custom_call.1} parent=1 // pred_region
      _
    $region25: #{tpu_custom_call.1} parent=1 // pred_fallthru
      _
    // Predicated region
    $region26: #{tpu_custom_call.1} parent=1 // pred_check
      _
    $region27: #{tpu_custom_call.1} parent=1 // pred_check_branch
      %49 = sbr.rel (0) target = $region29
    $region28: #{tpu_custom_call.1} parent=1 // pred_region
      _
    $region29: #{tpu_custom_call.1} parent=1 // pred_fallthru
      _
    // Predicated region
    $region30: #{tpu_custom_call.1} parent=1 // pred_check
      _
    $region31: #{tpu_custom_call.1} parent=1 // pred_check_branch
      %51 = sbr.rel (0) target = $region33
    $region32: #{tpu_custom_call.1} parent=1 // pred_region
      _
    $region33: #{tpu_custom_call.1} parent=1 // pred_fallthru
      _
    // Predicated region
    $region34: #{tpu_custom_call.1} parent=1 // pred_check
      _
    $region35: #{tpu_custom_call.1} parent=1 // pred_check_branch
      %53 = sbr.rel (0) target = $region37
    $region36: #{tpu_custom_call.1} parent=1 // pred_region
      %54 = dma.done [#allocation3], 256
    $region37: #{tpu_custom_call.1} parent=1 // pred_fallthru
      _
    // Predicated region
    $region38: #{tpu_custom_call.1} parent=1 // pred_check
      _
    $region39: #{tpu_custom_call.1} parent=1 // pred_check_branch
      %56 = sbr.rel (0) target = $region41
    $region40: #{tpu_custom_call.1} parent=1 // pred_region
      %57 = dma.done [#allocation6], 256
    $region41: #{tpu_custom_call.1} parent=1 // pred_fallthru
      _
    %v58 = vld [vmem:[%s0] sm:$0xff]
    %v59 = vld [vmem:[%s0 + $0x8] sm:$0xff]
    %v60 = vld [vmem:[#allocation2] sm:$0xff]
    %v61 = vld [vmem:[#allocation2 + $0x8] sm:$0xff]
    %v62 = vld [vmem:[#allocation5] sm:$0xff]
    %v63 = vld [vmem:[#allocation5 + $0x8] sm:$0xff]
    %vm64 = vcmask 130048
    %v66 = vsel %vm64, %v58, 0
    %v69 = vsel %vm64, %v59, 0
    %71 = vmatprep.subr.mxu0 0.0
    %72 = vmatpush1.msra.mxu0 %v62
    %73 = vmatprep.subr.mxu0 0.0
    %74 = vmatpush1.msra.mxu0 %v63
    %75 = vmatprep.subr.mxu0 0.0
    %76 = vmatpush1.msra.mxu0 0.0
    %77 = vmatprep.subr.mxu0 0.0
    %78 = vmatpush1.msra.mxu0 0.0
    %79 = vmatprep.subr.mxu0 0.0
    %80 = vmatpush1.msra.mxu0 0.0
    %81 = vmatprep.subr.mxu0 0.0
    %82 = vmatpush1.msra.mxu0 0.0
    %83 = vmatprep.subr.mxu0 0.0
    %84 = vmatpush1.msra.mxu0 0.0
    %85 = vmatprep.subr.mxu0 0.0
    %86 = vmatpush1.msra.mxu0 0.0
    %87 = vmatprep.subr.mxu0 0.0
    %88 = vmatpush1.msra.mxu0 0.0
    %89 = vmatprep.subr.mxu0 0.0
    %90 = vmatpush1.msra.mxu0 0.0
    %91 = vmatprep.subr.mxu0 0.0
    %92 = vmatpush1.msra.mxu0 0.0
    %93 = vmatprep.subr.mxu0 0.0
    %94 = vmatpush1.msra.mxu0 0.0
    %95 = vmatprep.subr.mxu0 0.0
    %96 = vmatpush1.msra.mxu0 0.0
    %97 = vmatprep.subr.mxu0 0.0
    %98 = vmatpush1.msra.mxu0 0.0
    %99 = vmatprep.subr.mxu0 0.0
    %100 = vmatpush1.msra.mxu0 0.0
    %101 = vmatprep.subr.mxu0 0.0
    %102 = vmatpush1.msra.mxu0 0.0
    %103 = vmatprep.subr.mxu0 0.0
    %104 = vmatpush1.msra.mxu0 0.0
    %105 = vmatprep.subr.mxu0 0.0
    %106 = vmatpush1.msra.mxu0 0.0
    %107 = vmatprep.subr.mxu0 0.0
    %108 = vmatpush1.msra.mxu0 0.0
    %109 = vmatprep.subr.mxu0 0.0
    %110 = vmatpush1.msra.mxu0 0.0
    %111 = vmatprep.subr.mxu0 0.0
    %112 = vmatpush1.msra.mxu0 0.0
    %113 = vmatprep.subr.mxu0 0.0
    %114 = vmatpush1.msra.mxu0 0.0
    %115 = vmatprep.subr.mxu0 0.0
    %116 = vmatpush1.msra.mxu0 0.0
    %117 = vmatprep.subr.mxu0 0.0
    %118 = vmatpush1.msra.mxu0 0.0
    %119 = vmatprep.subr.mxu0 0.0
    %120 = vmatpush1.msra.mxu0 0.0
    %121 = vmatprep.subr.mxu0 0.0
    %122 = vmatpush1.msra.mxu0 0.0
    %123 = vmatprep.subr.mxu0 0.0
    %124 = vmatpush1.msra.mxu0 0.0
    %125 = vmatprep.subr.mxu0 0.0
    %126 = vmatpush1.msra.mxu0 0.0
    %127 = vmatprep.subr.mxu0 0.0
    %128 = vmatpush1.msra.mxu0 0.0
    %129 = vmatprep.subr.mxu0 0.0
    %130 = vmatpush1.msra.mxu0 0.0
    %131 = vmatprep.subr.mxu0 0.0
    %132 = vmatpush1.msra.mxu0 0.0
    %133 = vmatprep.subr.mxu0 0.0
    %134 = vmatpush1.msra.mxu0 0.0
    %135 = vmatprep.mubr.f32.mxu0 0.0
    %136 = vmatmul.mubr.f32.gmra.mrb[0].mxu0 %v66
    %v137 = vpop.f32.mrb[0].mxu0
    %v138 = vadd.f32 0.0, %v137
    %v139 = vpop.f32.mrb[0].mxu0
    %140 = vmatprep.mubr.f32.mxu0 0.0
    %141 = vmatmul.mubr.f32.gmra.mrb[0].mxu0 %v69
    %v142 = vpop.f32.mrb[0].mxu0
    %v143 = vadd.f32 0.0, %v142
    %v144 = vpop.f32.mrb[0].mxu0
    %145 = vdwg.mxu0
    %vm146 = vcmask 64512
    %v148 = vsel %vm146, %v60, 0
    %150 = vmatprep.subr.mxu0 0.0
    %151 = vmatpush1.msra.mxu0 %v138
    %152 = vmatprep.subr.mxu0 0.0
    %153 = vmatpush1.msra.mxu0 0.0
    %154 = vmatprep.subr.mxu0 0.0
    %155 = vmatpush1.msra.mxu0 0.0
    %156 = vmatprep.subr.mxu0 0.0
    %157 = vmatpush1.msra.mxu0 0.0
    %158 = vmatprep.subr.mxu0 0.0
    %159 = vmatpush1.msra.mxu0 0.0
    %160 = vmatprep.subr.mxu0 0.0
    %161 = vmatpush1.msra.mxu0 0.0
    %162 = vmatprep.subr.mxu0 0.0
    %163 = vmatpush1.msra.mxu0 0.0
    %164 = vmatprep.subr.mxu0 0.0
    %165 = vmatpush1.msra.mxu0 0.0
    %166 = vmatprep.subr.mxu0 0.0
    %167 = vmatpush1.msra.mxu0 0.0
    %168 = vmatprep.subr.mxu0 0.0
    %169 = vmatpush1.msra.mxu0 0.0
    %170 = vmatprep.subr.mxu0 0.0
    %171 = vmatpush1.msra.mxu0 0.0
    %172 = vmatprep.subr.mxu0 0.0
    %173 = vmatpush1.msra.mxu0 0.0
    %174 = vmatprep.subr.mxu0 0.0
    %175 = vmatpush1.msra.mxu0 0.0
    %176 = vmatprep.subr.mxu0 0.0
    %177 = vmatpush1.msra.mxu0 0.0
    %178 = vmatprep.subr.mxu0 0.0
    %179 = vmatpush1.msra.mxu0 0.0
    %180 = vmatprep.subr.mxu0 0.0
    %181 = vmatpush1.msra.mxu0 0.0
    %182 = vmatprep.subr.mxu0 0.0
    %183 = vmatpush1.msra.mxu0 0.0
    %184 = vmatprep.subr.mxu0 0.0
    %185 = vmatpush1.msra.mxu0 0.0
    %186 = vmatprep.subr.mxu0 0.0
    %187 = vmatpush1.msra.mxu0 0.0
    %188 = vmatprep.subr.mxu0 0.0
    %189 = vmatpush1.msra.mxu0 0.0
    %190 = vmatprep.subr.mxu0 0.0
    %191 = vmatpush1.msra.mxu0 0.0
    %192 = vmatprep.subr.mxu0 0.0
    %193 = vmatpush1.msra.mxu0 0.0
    %194 = vmatprep.subr.mxu0 0.0
    %195 = vmatpush1.msra.mxu0 0.0
    %196 = vmatprep.subr.mxu0 0.0
    %197 = vmatpush1.msra.mxu0 0.0
    %198 = vmatprep.subr.mxu0 0.0
    %199 = vmatpush1.msra.mxu0 0.0
    %200 = vmatprep.subr.mxu0 0.0
    %201 = vmatpush1.msra.mxu0 0.0
    %202 = vmatprep.subr.mxu0 0.0
    %203 = vmatpush1.msra.mxu0 0.0
    %204 = vmatprep.subr.mxu0 0.0
    %205 = vmatpush1.msra.mxu0 0.0
    %206 = vmatprep.subr.mxu0 0.0
    %207 = vmatpush1.msra.mxu0 0.0
    %208 = vmatprep.subr.mxu0 0.0
    %209 = vmatpush1.msra.mxu0 0.0
    %210 = vmatprep.subr.mxu0 0.0
    %211 = vmatpush1.msra.mxu0 0.0
    %212 = vmatprep.subr.mxu0 0.0
    %213 = vmatpush1.msra.mxu0 0.0
    %214 = vmatprep.mubr.f32.mxu0 0.0
    %215 = vmatmul.mubr.f32.gmra.mrb[0].mxu0 %v148
    %v216 = vpop.f32.mrb[0].mxu0
    %v217 = vadd.f32 0.0, %v216
    %v218 = vpop.f32.mrb[0].mxu0
    %219 = vdwg.mxu0
    %v221 = vsel %vm146, %v61, 0
    %223 = vmatprep.subr.mxu0 0.0
    %224 = vmatpush1.msra.mxu0 %v143
    %225 = vmatprep.subr.mxu0 0.0
    %226 = vmatpush1.msra.mxu0 0.0
    %227 = vmatprep.subr.mxu0 0.0
    %228 = vmatpush1.msra.mxu0 0.0
    %229 = vmatprep.subr.mxu0 0.0
    %230 = vmatpush1.msra.mxu0 0.0
    %231 = vmatprep.subr.mxu0 0.0
    %232 = vmatpush1.msra.mxu0 0.0
    %233 = vmatprep.subr.mxu0 0.0
    %234 = vmatpush1.msra.mxu0 0.0
    %235 = vmatprep.subr.mxu0 0.0
    %236 = vmatpush1.msra.mxu0 0.0
    %237 = vmatprep.subr.mxu0 0.0
    %238 = vmatpush1.msra.mxu0 0.0
    %239 = vmatprep.subr.mxu0 0.0
    %240 = vmatpush1.msra.mxu0 0.0
    %241 = vmatprep.subr.mxu0 0.0
    %242 = vmatpush1.msra.mxu0 0.0
    %243 = vmatprep.subr.mxu0 0.0
    %244 = vmatpush1.msra.mxu0 0.0
    %245 = vmatprep.subr.mxu0 0.0
    %246 = vmatpush1.msra.mxu0 0.0
    %247 = vmatprep.subr.mxu0 0.0
    %248 = vmatpush1.msra.mxu0 0.0
    %249 = vmatprep.subr.mxu0 0.0
    %250 = vmatpush1.msra.mxu0 0.0
    %251 = vmatprep.subr.mxu0 0.0
    %252 = vmatpush1.msra.mxu0 0.0
    %253 = vmatprep.subr.mxu0 0.0
    %254 = vmatpush1.msra.mxu0 0.0
    %255 = vmatprep.subr.mxu0 0.0
    %256 = vmatpush1.msra.mxu0 0.0
    %257 = vmatprep.subr.mxu0 0.0
    %258 = vmatpush1.msra.mxu0 0.0
    %259 = vmatprep.subr.mxu0 0.0
    %260 = vmatpush1.msra.mxu0 0.0
    %261 = vmatprep.subr.mxu0 0.0
    %262 = vmatpush1.msra.mxu0 0.0
    %263 = vmatprep.subr.mxu0 0.0
    %264 = vmatpush1.msra.mxu0 0.0
    %265 = vmatprep.subr.mxu0 0.0
    %266 = vmatpush1.msra.mxu0 0.0
    %267 = vmatprep.subr.mxu0 0.0
    %268 = vmatpush1.msra.mxu0 0.0
    %269 = vmatprep.subr.mxu0 0.0
    %270 = vmatpush1.msra.mxu0 0.0
    %271 = vmatprep.subr.mxu0 0.0
    %272 = vmatpush1.msra.mxu0 0.0
    %273 = vmatprep.subr.mxu0 0.0
    %274 = vmatpush1.msra.mxu0 0.0
    %275 = vmatprep.subr.mxu0 0.0
    %276 = vmatpush1.msra.mxu0 0.0
    %277 = vmatprep.subr.mxu0 0.0
    %278 = vmatpush1.msra.mxu0 0.0
    %279 = vmatprep.subr.mxu0 0.0
    %280 = vmatpush1.msra.mxu0 0.0
    %281 = vmatprep.subr.mxu0 0.0
    %282 = vmatpush1.msra.mxu0 0.0
    %283 = vmatprep.subr.mxu0 0.0
    %284 = vmatpush1.msra.mxu0 0.0
    %285 = vmatprep.subr.mxu0 0.0
    %286 = vmatpush1.msra.mxu0 0.0
    %287 = vmatprep.mubr.f32.mxu0 0.0
    %288 = vmatmul.mubr.f32.gmra.mrb[0].mxu0 %v221
    %v289 = vpop.f32.mrb[0].mxu0
    %v290 = vadd.f32 0.0, %v289
    %v291 = vpop.f32.mrb[0].mxu0
    %292 = vdwg.mxu0
    %v293 = vld [vmem:[%s3] sm:$0x1]
    %v295 = vlaneseq
    %v296 = vshrl.u32 %v295, 7
    %v297 = vsub.s32 0, %v296
    %v298 = vrot.slane %v293, %v297
    %v300 = vadd.f32 %v217, %v298
    %v301 = vadd.f32 %v290, %v298
    %vm302 = vcmp.ge.f32.partialorder %v300, 0.0
    %vm303 = vcmp.ge.f32.partialorder %v301, 0.0
    %v304 = vmul.f32 %v300, 0.01
    %v305 = vmul.f32 %v301, 0.01
    %v306 = vsel %vm302, %v300, %v304
    %v307 = vsel %vm303, %v301, %v305
    %v308 = vld [vmem:[%s4] sm:$0xff]
    %v309 = vld [vmem:[%s4 + $0x8] sm:$0xff]
    %v310 = vld [vmem:[%s4 + $0x10] sm:$0xff]
    %v311 = vld [vmem:[%s4 + $0x18] sm:$0xff]
    %v312 = vld [vmem:[%s5] sm:$0x1]
    %v314 = vlaneseq
    %v315 = vshrl.u32 %v314, 7
    %v316 = vsub.s32 0, %v315
    %v317 = vrot.slane %v312, %v316
    %vm319 = vcmask 261120
    %v321 = vsel %vm319, %v306, 0
    %v324 = vsel %vm319, %v307, 0
    %326 = vmatprep.subr.mxu0 0.0
    %327 = vmatpush1.msra.mxu0 %v308
    %328 = vmatprep.subr.mxu0 0.0
    %329 = vmatpush1.msra.mxu0 %v309
    %330 = vmatprep.subr.mxu0 0.0
    %331 = vmatpush1.msra.mxu0 %v310
    %332 = vmatprep.subr.mxu0 0.0
    %333 = vmatpush1.msra.mxu0 %v311
    %334 = vmatprep.subr.mxu0 0.0
    %335 = vmatpush1.msra.mxu0 0.0
    %336 = vmatprep.subr.mxu0 0.0
    %337 = vmatpush1.msra.mxu0 0.0
    %338 = vmatprep.subr.mxu0 0.0
    %339 = vmatpush1.msra.mxu0 0.0
    %340 = vmatprep.subr.mxu0 0.0
    %341 = vmatpush1.msra.mxu0 0.0
    %342 = vmatprep.subr.mxu0 0.0
    %343 = vmatpush1.msra.mxu0 0.0
    %344 = vmatprep.subr.mxu0 0.0
    %345 = vmatpush1.msra.mxu0 0.0
    %346 = vmatprep.subr.mxu0 0.0
    %347 = vmatpush1.msra.mxu0 0.0
    %348 = vmatprep.subr.mxu0 0.0
    %349 = vmatpush1.msra.mxu0 0.0
    %350 = vmatprep.subr.mxu0 0.0
    %351 = vmatpush1.msra.mxu0 0.0
    %352 = vmatprep.subr.mxu0 0.0
    %353 = vmatpush1.msra.mxu0 0.0
    %354 = vmatprep.subr.mxu0 0.0
    %355 = vmatpush1.msra.mxu0 0.0
    %356 = vmatprep.subr.mxu0 0.0
    %357 = vmatpush1.msra.mxu0 0.0
    %358 = vmatprep.subr.mxu0 0.0
    %359 = vmatpush1.msra.mxu0 0.0
    %360 = vmatprep.subr.mxu0 0.0
    %361 = vmatpush1.msra.mxu0 0.0
    %362 = vmatprep.subr.mxu0 0.0
    %363 = vmatpush1.msra.mxu0 0.0
    %364 = vmatprep.subr.mxu0 0.0
    %365 = vmatpush1.msra.mxu0 0.0
    %366 = vmatprep.subr.mxu0 0.0
    %367 = vmatpush1.msra.mxu0 0.0
    %368 = vmatprep.subr.mxu0 0.0
    %369 = vmatpush1.msra.mxu0 0.0
    %370 = vmatprep.subr.mxu0 0.0
    %371 = vmatpush1.msra.mxu0 0.0
    %372 = vmatprep.subr.mxu0 0.0
    %373 = vmatpush1.msra.mxu0 0.0
    %374 = vmatprep.subr.mxu0 0.0
    %375 = vmatpush1.msra.mxu0 0.0
    %376 = vmatprep.subr.mxu0 0.0
    %377 = vmatpush1.msra.mxu0 0.0
    %378 = vmatprep.subr.mxu0 0.0
    %379 = vmatpush1.msra.mxu0 0.0
    %380 = vmatprep.subr.mxu0 0.0
    %381 = vmatpush1.msra.mxu0 0.0
    %382 = vmatprep.subr.mxu0 0.0
    %383 = vmatpush1.msra.mxu0 0.0
    %384 = vmatprep.subr.mxu0 0.0
    %385 = vmatpush1.msra.mxu0 0.0
    %386 = vmatprep.subr.mxu0 0.0
    %387 = vmatpush1.msra.mxu0 0.0
    %388 = vmatprep.subr.mxu0 0.0
    %389 = vmatpush1.msra.mxu0 0.0
    %390 = vmatprep.mubr.f32.mxu0 0.0
    %391 = vmatmul.mubr.f32.gmra.mrb[0].mxu0 %v321
    %v392 = vpop.f32.mrb[0].mxu0
    %v393 = vadd.f32 %v317, %v392
    %v394 = vpop.f32.mrb[0].mxu0
    %395 = vmatprep.mubr.f32.mxu0 0.0
    %396 = vmatmul.mubr.f32.gmra.mrb[0].mxu0 %v324
    %v397 = vpop.f32.mrb[0].mxu0
    %v398 = vadd.f32 %v317, %v397
    %v399 = vpop.f32.mrb[0].mxu0
    %400 = vdwg.mxu0
    %vm401 = vcmp.ge.f32.partialorder %v393, 0.0
    %vm402 = vcmp.ge.f32.partialorder %v398, 0.0
    %v403 = vmul.f32 %v393, 0.01
    %v404 = vmul.f32 %v398, 0.01
    %v405 = vsel %vm401, %v393, %v403
    %v406 = vsel %vm402, %v398, %v404
    %v407 = vsel %vm319, %v405, 0.0
    %v408 = vrot.slane %v407, 4
    %v409 = vadd.f32 %v407, %v408
    %v410 = vrot.slane %v409, 2
    %v411 = vadd.f32 %v409, %v410
    %v412 = vrot.slane %v411, 1
    %v413 = vadd.f32 %v411, %v412
    %v414 = vsel %vm319, %v406, 0.0
    %v415 = vrot.slane %v414, 4
    %v416 = vadd.f32 %v414, %v415
    %v417 = vrot.slane %v416, 2
    %v418 = vadd.f32 %v416, %v417
    %v419 = vrot.slane %v418, 1
    %v420 = vadd.f32 %v418, %v419
    %v421 = vld [vmem:[%s6] sm:$0xff]
    %v422 = vld [vmem:[%s6 + $0x8] sm:$0xff]
    %v423 = vld [vmem:[%s6 + $0x10] sm:$0xff]
    %v424 = vld [vmem:[%s6 + $0x18] sm:$0xff]
    %v425 = vld [vmem:[%s7] sm:$0x1]
    %v426 = vmul.f32 %v425, 8.0
    %v428 = vlaneseq
    %v429 = vshrl.u32 %v428, 7
    %v430 = vsub.s32 0, %v429
    %v431 = vrot.slane %v426, %v430
    %vm435 = vcmask 1041409
    %v436 = vsel %vm435, %v420, %v413
    %v437 = vsel %vm319, %v436, 0
    %439 = vmatprep.subr.mxu0 0.0
    %440 = vmatpush1.msra.mxu0 %v421
    %441 = vmatprep.subr.mxu0 0.0
    %442 = vmatpush1.msra.mxu0 %v422
    %443 = vmatprep.subr.mxu0 0.0
    %444 = vmatpush1.msra.mxu0 %v423
    %445 = vmatprep.subr.mxu0 0.0
    %446 = vmatpush1.msra.mxu0 %v424
    %447 = vmatprep.subr.mxu0 0.0
    %448 = vmatpush1.msra.mxu0 0.0
    %449 = vmatprep.subr.mxu0 0.0
    %450 = vmatpush1.msra.mxu0 0.0
    %451 = vmatprep.subr.mxu0 0.0
    %452 = vmatpush1.msra.mxu0 0.0
    %453 = vmatprep.subr.mxu0 0.0
    %454 = vmatpush1.msra.mxu0 0.0
    %455 = vmatprep.subr.mxu0 0.0
    %456 = vmatpush1.msra.mxu0 0.0
    %457 = vmatprep.subr.mxu0 0.0
    %458 = vmatpush1.msra.mxu0 0.0
    %459 = vmatprep.subr.mxu0 0.0
    %460 = vmatpush1.msra.mxu0 0.0
    %461 = vmatprep.subr.mxu0 0.0
    %462 = vmatpush1.msra.mxu0 0.0
    %463 = vmatprep.subr.mxu0 0.0
    %464 = vmatpush1.msra.mxu0 0.0
    %465 = vmatprep.subr.mxu0 0.0
    %466 = vmatpush1.msra.mxu0 0.0
    %467 = vmatprep.subr.mxu0 0.0
    %468 = vmatpush1.msra.mxu0 0.0
    %469 = vmatprep.subr.mxu0 0.0
    %470 = vmatpush1.msra.mxu0 0.0
    %471 = vmatprep.subr.mxu0 0.0
    %472 = vmatpush1.msra.mxu0 0.0
    %473 = vmatprep.subr.mxu0 0.0
    %474 = vmatpush1.msra.mxu0 0.0
    %475 = vmatprep.subr.mxu0 0.0
    %476 = vmatpush1.msra.mxu0 0.0
    %477 = vmatprep.subr.mxu0 0.0
    %478 = vmatpush1.msra.mxu0 0.0
    %479 = vmatprep.subr.mxu0 0.0
    %480 = vmatpush1.msra.mxu0 0.0
    %481 = vmatprep.subr.mxu0 0.0
    %482 = vmatpush1.msra.mxu0 0.0
    %483 = vmatprep.subr.mxu0 0.0
    %484 = vmatpush1.msra.mxu0 0.0
    %485 = vmatprep.subr.mxu0 0.0
    %486 = vmatpush1.msra.mxu0 0.0
    %487 = vmatprep.subr.mxu0 0.0
    %488 = vmatpush1.msra.mxu0 0.0
    %489 = vmatprep.subr.mxu0 0.0
    %490 = vmatpush1.msra.mxu0 0.0
    %491 = vmatprep.subr.mxu0 0.0
    %492 = vmatpush1.msra.mxu0 0.0
    %493 = vmatprep.subr.mxu0 0.0
    %494 = vmatpush1.msra.mxu0 0.0
    %495 = vmatprep.subr.mxu0 0.0
    %496 = vmatpush1.msra.mxu0 0.0
    %497 = vmatprep.subr.mxu0 0.0
    %498 = vmatpush1.msra.mxu0 0.0
    %499 = vmatprep.subr.mxu0 0.0
    %500 = vmatpush1.msra.mxu0 0.0
    %501 = vmatprep.subr.mxu0 0.0
    %502 = vmatpush1.msra.mxu0 0.0
    %503 = vmatprep.mubr.f32.mxu0 0.0
    %504 = vmatmul.mubr.f32.gmra.mrb[0].mxu0 %v437
    %v505 = vpop.f32.mrb[0].mxu0
    %v506 = vadd.f32 %v431, %v505
    %v507 = vpop.f32.mrb[0].mxu0
    %508 = vdwg.mxu0
    %v509 = vtanh.pop %v506
    %vm510 = vcmask 58368
    %511 = vst.msk [vmem:[#allocation7] sm:$0x3] %vm510, %v509
    // Predicated region
    $region42: #{tpu_custom_call.1} parent=1 // pred_check
      _
    $region43: #{tpu_custom_call.1} parent=1 // pred_check_branch
      %513 = sbr.rel (0) target = $region45
    $region44: #{tpu_custom_call.1} parent=1 // pred_region
      %s515 = ssub.s32 32, 32
      %516 = vsyncadd [#allocation4], %s515
      %s518 = sshll.u32 [#allocation7], 4
      %s519 = int_to_ptr.vmem [resolvable:$true] %s518
      %521 = dma.vmem_to_hbm [thread:$0]  %s519, 32, %s8, [#allocation4]
    $region45: #{tpu_custom_call.1} parent=1 // pred_fallthru
      _
    // Predicated region
    $region46: #{tpu_custom_call.1} parent=1 // pred_check
      _
    $region47: #{tpu_custom_call.1} parent=1 // pred_check_branch
      %523 = sbr.rel (0) target = $region49
    $region48: #{tpu_custom_call.1} parent=1 // pred_region
      %524 = dma.done [#allocation4], 32
    $region49: #{tpu_custom_call.1} parent=1 // pred_fallthru
      _
    %525 = vsyncpa [#allocation3], 1
    %526 = vsyncpa [#allocation6], 1
    %527 = vsyncpa [#allocation4], 1

</llo_original>
